<compile_context>
chip_gen: v5e
topology: v5e:2x2
jax: 0.10.0
libtpu: 0.0.40
codegen_flags: <defaults>
</compile_context>

<pallas_src>
import jax
import jax.numpy as jnp
from jax.experimental import pallas as pl
from jax.experimental.pallas import tpu as pltpu


def critic_kernel(x_ref, w1_ref, b1_ref, w2_ref, b2_ref, w3_ref, b3_ref, o_ref):
    # x_ref : (tile_b, D) f32   w1_ref: (D, 64)  f32   b1_ref: (1, 64)  f32
    # w2_ref: (64, 128)   f32   b2_ref: (1, 128) f32
    # w3_ref: (1, 128)    f32   b3_ref: (1, 1)   f32
    # o_ref : (tile_b, 1) f32
    h1 = jnp.dot(x_ref[...], w1_ref[...], preferred_element_type=jnp.float32)
    h1 = jnp.maximum(h1 + b1_ref[...], 0.0)                      # (tile_b, 64)

    h2 = jnp.dot(h1, w2_ref[...], preferred_element_type=jnp.float32)
    h2 = jnp.maximum(h2 + b2_ref[...], 0.0)                      # (tile_b, 128)

    # Final 128 -> 1 projection: an N=1 MXU matmul would waste almost the whole
    # array; VPU multiply + cross-lane (XLU) reduce uses idle slots instead.
    v = jnp.sum(h2 * w3_ref[...], axis=1, keepdims=True) + b3_ref[...]
    o_ref[...] = v.astype(o_ref.dtype)                           # (tile_b, 1)


_LANE = 128
_SUBLANE = 8
# Working-set target for the batch tile.  Kept well under the 32 MiB scoped
# VMEM limit requested below so the same tile is safe on v5e/v6e (128 MiB
# physical) and v7x (64 MiB physical per TensorCore, 32 MiB scoped default).
_VMEM_TILE_BUDGET = 12 * 1024 * 1024


def _round_up(n, m):
    return -(-n // m) * m


def _choose_tile_b(B, D):
    """VMEM-budget-driven batch tile (batch lives on the sublane axis)."""
    # Per-batch-row VMEM cost at the chosen tile height:
    #   x block   : lane-padded row (ceil(D/128)*128*4 B)  x 2 pipeline buffers
    #   out block : (tile_b, 1) padded to 128 lanes (512 B) x 2 pipeline buffers
    #   h1/h2/ReLU and compiler temporaries: generous 4 KiB allowance
    per_row = 2 * _round_up(max(D, 1), _LANE) * 4 + 2 * _LANE * 4 + 4096
    tile = max(_SUBLANE, _VMEM_TILE_BUDGET // per_row)
    if B >= 4096:
        # Guarantee >= 2 grid steps so the "parallel" batch axis can split
        # across both v7x TensorCores.  On single-TC v5e/v6e this costs only
        # ~one extra 0.35 us grid step (and buys DMA/compute overlap).
        tile = min(tile, _round_up(pl.cdiv(B, 2), _SUBLANE))
    if tile >= B:
        return B                      # one fat grid step for small batches
    return max(_SUBLANE, (tile // _SUBLANE) * _SUBLANE)


def critic_forward(x, params, *, tile_b=None):
    """x: (B, innershape) float32.  Returns (B, 1) float32 (== PyTorch forward)."""
    w1, b1, w2, b2, w3, b3 = params   # PyTorch layout: (out, in) weights, (out,) biases
    B, D = x.shape
    if x.dtype != jnp.float32:        # keep the input path op-free for f32 callers
        x = x.astype(jnp.float32)
    if tile_b is None:
        tile_b = _choose_tile_b(B, D)
    grid = (pl.cdiv(B, tile_b),)      # partial last block is masked by Pallas

    # Tiny (< 64 KiB total) weight re-layouts; negligible vs. x traffic and
    # resident in VMEM across all grid steps.  x itself is passed straight
    # through -- no transpose / cast HBM roundtrip.
    w1t = w1.T                        # (D, 64)
    w2t = w2.T                        # (64, 128)
    b1r = b1.reshape(1, 64)
    b2r = b2.reshape(1, 128)
    w3r = w3.reshape(1, 128)
    b3r = b3.reshape(1, 1)

    flops = 2 * B * (D * 64 + 64 * 128 + 128)
    bytes_accessed = (B * D + B) * 4 + (w1t.size + w2t.size + 64 + 128 + 128 + 1) * 4

    out = pl.pallas_call(
        critic_kernel,
        out_shape=jax.ShapeDtypeStruct((B, 1), jnp.float32),
        grid=grid,
        in_specs=[
            # batch-tiled activations in their natural (B, D) layout
            pl.BlockSpec((tile_b, D), lambda i: (i, 0)),
            # weights / biases: full blocks, grid-invariant index_map -> stay
            # resident in VMEM for the whole grid (< 100 KiB total).
            pl.BlockSpec((D, 64), lambda i: (0, 0)),
            pl.BlockSpec((1, 64), lambda i: (0, 0)),
            pl.BlockSpec((64, 128), lambda i: (0, 0)),
            pl.BlockSpec((1, 128), lambda i: (0, 0)),
            pl.BlockSpec((1, 128), lambda i: (0, 0)),
            pl.BlockSpec((1, 1), lambda i: (0, 0)),
        ],
        out_specs=pl.BlockSpec((tile_b, 1), lambda i: (i, 0)),
        compiler_params=pltpu.CompilerParams(
            dimension_semantics=("parallel",),
            # explicit scoped limit: raises v5e's 16 MiB default, stays within
            # v7x's 64 MiB physical per-TC VMEM.
            vmem_limit_bytes=32 * 1024 * 1024),
        cost_estimate=pl.CostEstimate(
            flops=flops, transcendentals=0, bytes_accessed=bytes_accessed),
    )(x, w1t, b1r, w2t, b2r, w3r, b3r)

    return out                        # (B, 1)


def init_params(key, innershape):
    """PyTorch Linear default init (U[-1/sqrt(fan_in), 1/sqrt(fan_in)]),
    stored in PyTorch (out, in) / (out,) layout for drop-in fidelity."""
    def linear(key, fan_in, fan_out):
        kw, kb = jax.random.split(key)
        bound = 1.0 / jnp.sqrt(fan_in)
        w = jax.random.uniform(kw, (fan_out, fan_in), jnp.float32, -bound, bound)
        b = jax.random.uniform(kb, (fan_out,), jnp.float32, -bound, bound)
        return w, b

    k1, k2, k3 = jax.random.split(key, 3)
    w1, b1 = linear(k1, innershape, 64)    # (64, D), (64,)
    w2, b2 = linear(k2, 64, 128)           # (128, 64), (128,)
    w3, b3 = linear(k3, 128, 1)            # (1, 128), (1,)
    return (w1, b1, w2, b2, w3, b3)


def reference_forward(x, params):
    w1, b1, w2, b2, w3, b3 = params
    h = jnp.maximum(x @ w1.T + b1, 0.0)
    h = jnp.maximum(h @ w2.T + b2, 0.0)
    return h @ w3.T + b3


if __name__ == "__main__":
    key = jax.random.PRNGKey(0)
    kx, kp = jax.random.split(key)

    innershape = 4                     # Pendulum: obs(3) + action(1) concat
    params = init_params(kp, innershape)

    # Small batch: single fat grid step, block == whole batch.
    x = jax.random.normal(kx, (8, innershape), jnp.float32)
    out = critic_forward(x, params)
    jax.block_until_ready(out)
    ref = reference_forward(x, params)
    assert out.shape == (8, 1)
    assert jnp.allclose(out, ref, atol=2e-2, rtol=2e-2), float(jnp.max(jnp.abs(out - ref)))

    # Multi-step grid with a masked partial last block: B=200, tile_b=64 ->
    # 4 grid steps, the last one only 8 valid rows (exercises the cdiv path
    # that replaces the old exact-divisibility requirement).
    x2 = jax.random.normal(kx, (200, innershape), jnp.float32)
    out2 = critic_forward(x2, params, tile_b=64)
    jax.block_until_ready(out2)
    ref2 = reference_forward(x2, params)
    assert out2.shape == (200, 1)
    assert jnp.allclose(out2, ref2, atol=2e-2, rtol=2e-2), float(jnp.max(jnp.abs(out2 - ref2)))

    print("KERNEL_OK")
</pallas_src>

<mosaic_0001>
module attributes {stable_mosaic.version = 11 : i64} {
  func.func @critic_kernel(%arg0: i32, %arg1: memref<8x4xf32, #tpu.memory_space<vmem>>, %arg2: memref<4x64xf32, #tpu.memory_space<vmem>>, %arg3: memref<1x64xf32, #tpu.memory_space<vmem>>, %arg4: memref<64x128xf32, #tpu.memory_space<vmem>>, %arg5: memref<1x128xf32, #tpu.memory_space<vmem>>, %arg6: memref<1x128xf32, #tpu.memory_space<vmem>>, %arg7: memref<1x1xf32, #tpu.memory_space<vmem>>, %arg8: memref<8x1xf32, #tpu.memory_space<vmem>>) attributes {dimension_semantics = [#tpu.dimension_semantics<parallel>], iteration_bounds = array<i64: 1>, scalar_prefetch = 0 : i64, scratch_operands = 0 : i64, tpu.core_type = #tpu.core_type<tc>, window_params = [{transform_indices = @transform_0, window_bounds = array<i64: 8, 4>}, {pipeline_mode = #tpu.pipeline_mode<synchronous>, transform_indices = @transform_1, window_bounds = array<i64: 4, 64>}, {pipeline_mode = #tpu.pipeline_mode<synchronous>, transform_indices = @transform_2, window_bounds = array<i64: 1, 64>}, {pipeline_mode = #tpu.pipeline_mode<synchronous>, transform_indices = @transform_3, window_bounds = array<i64: 64, 128>}, {pipeline_mode = #tpu.pipeline_mode<synchronous>, transform_indices = @transform_4, window_bounds = array<i64: 1, 128>}, {pipeline_mode = #tpu.pipeline_mode<synchronous>, transform_indices = @transform_5, window_bounds = array<i64: 1, 128>}, {pipeline_mode = #tpu.pipeline_mode<synchronous>, transform_indices = @transform_6, window_bounds = array<i64: 1, 1>}, {transform_indices = @transform_7, window_bounds = array<i64: 8, 1>}]} {
    %c0 = arith.constant 0 : index
    %c0_0 = arith.constant 0 : index
    %0 = vector.load %arg1[%c0, %c0_0] : memref<8x4xf32, #tpu.memory_space<vmem>>, vector<8x4xf32>
    %c0_1 = arith.constant 0 : index
    %c0_2 = arith.constant 0 : index
    %1 = vector.load %arg2[%c0_1, %c0_2] : memref<4x64xf32, #tpu.memory_space<vmem>>, vector<4x64xf32>
    %cst = arith.constant dense<0.000000e+00> : vector<8x64xf32>
    %2 = tpu.matmul %0, %1, %cst {dimension_numbers = #tpu.dot_dimension_numbers<[1], [0], [0], [1], [0, 0, 1, 1], [], []>} : vector<8x4xf32>, vector<4x64xf32>, vector<8x64xf32> -> vector<8x64xf32>
    %c0_3 = arith.constant 0 : index
    %c0_4 = arith.constant 0 : index
    %3 = vector.load %arg3[%c0_3, %c0_4] : memref<1x64xf32, #tpu.memory_space<vmem>>, vector<1x64xf32>
    %4 = vector.broadcast %3 : vector<1x64xf32> to vector<8x64xf32>
    %5 = arith.addf %2, %4 : vector<8x64xf32>
    %cst_5 = arith.constant 0.000000e+00 : f32
    %6 = vector.broadcast %cst_5 : f32 to vector<8x64xf32>
    %7 = arith.maximumf %5, %6 : vector<8x64xf32>
    %c0_6 = arith.constant 0 : index
    %c0_7 = arith.constant 0 : index
    %8 = vector.load %arg4[%c0_6, %c0_7] : memref<64x128xf32, #tpu.memory_space<vmem>>, vector<64x128xf32>
    %cst_8 = arith.constant dense<0.000000e+00> : vector<8x128xf32>
    %9 = tpu.matmul %7, %8, %cst_8 {dimension_numbers = #tpu.dot_dimension_numbers<[1], [0], [0], [1], [0, 0, 1, 1], [], []>} : vector<8x64xf32>, vector<64x128xf32>, vector<8x128xf32> -> vector<8x128xf32>
    %c0_9 = arith.constant 0 : index
    %c0_10 = arith.constant 0 : index
    %10 = vector.load %arg5[%c0_9, %c0_10] : memref<1x128xf32, #tpu.memory_space<vmem>>, vector<1x128xf32>
    %11 = vector.broadcast %10 : vector<1x128xf32> to vector<8x128xf32>
    %12 = arith.addf %9, %11 : vector<8x128xf32>
    %cst_11 = arith.constant 0.000000e+00 : f32
    %13 = vector.broadcast %cst_11 : f32 to vector<8x128xf32>
    %14 = arith.maximumf %12, %13 : vector<8x128xf32>
    %c0_12 = arith.constant 0 : index
    %c0_13 = arith.constant 0 : index
    %15 = vector.load %arg6[%c0_12, %c0_13] : memref<1x128xf32, #tpu.memory_space<vmem>>, vector<1x128xf32>
    %16 = vector.broadcast %15 : vector<1x128xf32> to vector<8x128xf32>
    %17 = arith.mulf %14, %16 : vector<8x128xf32>
    %cst_14 = arith.constant dense<0.000000e+00> : vector<8xf32>
    %18 = vector.multi_reduction <add>, %17, %cst_14 [1] : vector<8x128xf32> to vector<8xf32>
    %19 = vector.shape_cast %18 : vector<8xf32> to vector<8x1xf32>
    %c0_15 = arith.constant 0 : index
    %c0_16 = arith.constant 0 : index
    %20 = vector.load %arg7[%c0_15, %c0_16] : memref<1x1xf32, #tpu.memory_space<vmem>>, vector<1x1xf32>
    %21 = vector.broadcast %20 : vector<1x1xf32> to vector<8x1xf32>
    %22 = arith.addf %19, %21 : vector<8x1xf32>
    %c0_17 = arith.constant 0 : index
    %c0_18 = arith.constant 0 : index
    %23 = vector.load %arg8[%c0_17, %c0_18] : memref<8x1xf32, #tpu.memory_space<vmem>>, vector<8x1xf32>
    tpu.vector_store %arg8[%c0_17, %c0_18], %22 {strides = array<i32>} : memref<8x1xf32, #tpu.memory_space<vmem>>, vector<8x1xf32>,
    return
  }
  func.func @transform_0(%arg0: i32) -> (i32, i32) {
    %c0_i32 = arith.constant 0 : i32
    %c0_i32_0 = arith.constant 0 : i32
    return %arg0, %c0_i32 : i32, i32
  }
  func.func @transform_1(%arg0: i32) -> (i32, i32) {
    %c0_i32 = arith.constant 0 : i32
    %c0_i32_0 = arith.constant 0 : i32
    %c0_i32_1 = arith.constant 0 : i32
    return %c0_i32, %c0_i32_0 : i32, i32
  }
  func.func @transform_2(%arg0: i32) -> (i32, i32) {
    %c0_i32 = arith.constant 0 : i32
    %c0_i32_0 = arith.constant 0 : i32
    %c0_i32_1 = arith.constant 0 : i32
    return %c0_i32, %c0_i32_0 : i32, i32
  }
  func.func @transform_3(%arg0: i32) -> (i32, i32) {
    %c0_i32 = arith.constant 0 : i32
    %c0_i32_0 = arith.constant 0 : i32
    %c0_i32_1 = arith.constant 0 : i32
    return %c0_i32, %c0_i32_0 : i32, i32
  }
  func.func @transform_4(%arg0: i32) -> (i32, i32) {
    %c0_i32 = arith.constant 0 : i32
    %c0_i32_0 = arith.constant 0 : i32
    %c0_i32_1 = arith.constant 0 : i32
    return %c0_i32, %c0_i32_0 : i32, i32
  }
  func.func @transform_5(%arg0: i32) -> (i32, i32) {
    %c0_i32 = arith.constant 0 : i32
    %c0_i32_0 = arith.constant 0 : i32
    %c0_i32_1 = arith.constant 0 : i32
    return %c0_i32, %c0_i32_0 : i32, i32
  }
  func.func @transform_6(%arg0: i32) -> (i32, i32) {
    %c0_i32 = arith.constant 0 : i32
    %c0_i32_0 = arith.constant 0 : i32
    %c0_i32_1 = arith.constant 0 : i32
    return %c0_i32, %c0_i32_0 : i32, i32
  }
  func.func @transform_7(%arg0: i32) -> (i32, i32) {
    %c0_i32 = arith.constant 0 : i32
    %c0_i32_0 = arith.constant 0 : i32
    return %arg0, %c0_i32 : i32, i32
  }
}

</mosaic_0001>

<llo_original>
// kernel: tpu_custom_call.1
$region0: #{tpu_custom_call.1}
  #allocation0 [shape = 'u32[]', space=smem, size = 0x4, offset = 0x4, fixed_abs, tag = 'smem constant byte address 0x4 - core index']
  #allocation1 [shape = 'u32[72,128]{1,0:T(1,128)}', space=vmem, size = 0x9000, scoped, tag = 'internal scratch']
  #allocation2 [shape = 'f32[1,1]{1,0:T(1,128)S(1)}', space=vmem, size = 0x200, scoped, tag = 'scoped memory for tpu_custom_call.1']
  %s0 = inlined_call_operand.vmem [shape: f32[8,4], index: 0, kind: input, shape index: {}]
  %s1 = inlined_call_operand.vmem [shape: f32[4,64], index: 1, kind: input, shape index: {}]
  %s2 = inlined_call_operand.vmem [shape: f32[1,64], index: 2, kind: input, shape index: {}]
  %s3 = inlined_call_operand.hbm [shape: f32[64,128], index: 3, kind: input, shape index: {}]
  %s4 = inlined_call_operand.vmem [shape: f32[1,128], index: 4, kind: input, shape index: {}]
  %s5 = inlined_call_operand.vmem [shape: f32[1,128], index: 5, kind: input, shape index: {}]
  %s6 = inlined_call_operand.<no memory space> [shape: f32[1,1], index: 6, kind: input, shape index: {}]
  %s7 = inlined_call_operand.vmem [shape: f32[8,1], index: 7, kind: output, shape index: {}]
  %s8 = sld [smem:[#allocation0]]
  $region42: #{tpu_custom_call.1} parent=0
    _
  %s10 = ssub.s32 1, %s8
  %s11 = scalar_select 0, %s10, %s8
  %v12 = vstv %s6
  %13 = vst [vmem:[#allocation2] sm:$0x1] %v12
  $region1: #{tpu_custom_call.1} parent=0
    #allocation3 [shape = 'u8[32768]{0}', space=vmem, size = 0x8000, scoped, tag = 'input window, operand 3, single buffered']
    #allocation4 [shape = 's32[1]{0}', space=sflag, size = 0x4, scoped, tag = 'scoped memory for tpu_custom_call.1']
    %14 = vsyncpa [#allocation4], 0
    // Predicated region
    $region2: #{tpu_custom_call.1} parent=1 // pred_check
      _
    $region3: #{tpu_custom_call.1} parent=1 // pred_check_branch
      %16 = sbr.rel (0) target = $region5
    $region4: #{tpu_custom_call.1} parent=1 // pred_region
      _
    $region5: #{tpu_custom_call.1} parent=1 // pred_fallthru
      _
    // Predicated region
    $region6: #{tpu_custom_call.1} parent=1 // pred_check
      _
    $region7: #{tpu_custom_call.1} parent=1 // pred_check_branch
      %18 = sbr.rel (0) target = $region9
    $region8: #{tpu_custom_call.1} parent=1 // pred_region
      _
    $region9: #{tpu_custom_call.1} parent=1 // pred_fallthru
      _
    // Predicated region
    $region10: #{tpu_custom_call.1} parent=1 // pred_check
      _
    $region11: #{tpu_custom_call.1} parent=1 // pred_check_branch
      %20 = sbr.rel (0) target = $region13
    $region12: #{tpu_custom_call.1} parent=1 // pred_region
      _
    $region13: #{tpu_custom_call.1} parent=1 // pred_fallthru
      _
    // Predicated region
    $region14: #{tpu_custom_call.1} parent=1 // pred_check
      _
    $region15: #{tpu_custom_call.1} parent=1 // pred_check_branch
      %22 = sbr.rel (0) target = $region17
    $region16: #{tpu_custom_call.1} parent=1 // pred_region
      %24 = vsyncadd [#allocation4], 0
      %s25 = sshll.u32 %s3, 4
      %s26 = int_to_ptr.hbm [resolvable:$true] %s25
      %s27 = sshll.u32 [#allocation3], 4
      %s28 = int_to_ptr.vmem [resolvable:$true] %s27
      %33 = dma.hbm_to_vmem [thread:$0]  %s26, 1024, %s28, [#allocation4], 128, 128, 8
    $region17: #{tpu_custom_call.1} parent=1 // pred_fallthru
      _
    // Predicated region
    $region18: #{tpu_custom_call.1} parent=1 // pred_check
      _
    $region19: #{tpu_custom_call.1} parent=1 // pred_check_branch
      %35 = sbr.rel (0) target = $region21
    $region20: #{tpu_custom_call.1} parent=1 // pred_region
      _
    $region21: #{tpu_custom_call.1} parent=1 // pred_fallthru
      _
    // Predicated region
    $region22: #{tpu_custom_call.1} parent=1 // pred_check
      _
    $region23: #{tpu_custom_call.1} parent=1 // pred_check_branch
      %37 = sbr.rel (0) target = $region25
    $region24: #{tpu_custom_call.1} parent=1 // pred_region
      _
    $region25: #{tpu_custom_call.1} parent=1 // pred_fallthru
      _
    // Predicated region
    $region26: #{tpu_custom_call.1} parent=1 // pred_check
      _
    $region27: #{tpu_custom_call.1} parent=1 // pred_check_branch
      %39 = sbr.rel (0) target = $region29
    $region28: #{tpu_custom_call.1} parent=1 // pred_region
      _
    $region29: #{tpu_custom_call.1} parent=1 // pred_fallthru
      _
    // Predicated region
    $region30: #{tpu_custom_call.1} parent=1 // pred_check
      _
    $region31: #{tpu_custom_call.1} parent=1 // pred_check_branch
      %41 = sbr.rel (0) target = $region33
    $region32: #{tpu_custom_call.1} parent=1 // pred_region
      %43 = dma.done [#allocation4], 1024
    $region33: #{tpu_custom_call.1} parent=1 // pred_fallthru
      _
    %v44 = vld [vmem:[%s0] sm:$0xff]
    %v45 = vld [vmem:[%s1] sm:$0xf]
    %v46 = vld [vmem:[%s2] sm:$0x1]
    %v48 = vperm.slane %v46, 0
    %vm50 = vcmask 31744
    %v52 = vsel %vm50, %v44, 0
    %vm54 = vcmask 1043456
    %v56 = vsel %vm54, %v45, 0
    %58 = vmatpush.msra.mxu0 0.0
    %59 = vmatpush.msra.mxu0 0.0
    %60 = vmatpush.msra.mxu0 0.0
    %61 = vmatpush.msra.mxu0 0.0
    %62 = vmatpush.msra.mxu0 0.0
    %63 = vmatpush.msra.mxu0 0.0
    %64 = vmatpush.msra.mxu0 0.0
    %65 = vmatpush.msra.mxu0 0.0
    %66 = vmatpush.msra.mxu0 0.0
    %67 = vmatpush.msra.mxu0 0.0
    %68 = vmatpush.msra.mxu0 0.0
    %69 = vmatpush.msra.mxu0 0.0
    %70 = vmatpush.msra.mxu0 0.0
    %71 = vmatpush.msra.mxu0 0.0
    %72 = vmatpush.msra.mxu0 0.0
    %73 = vmatpush.msra.mxu0 %v56
    %74 = vmatmul.f32.gmra.mxu0 %v52
    %v75 = vpop.f32.mrf.mxu0
    %v76 = vadd.f32 %v48, %v75
    %77 = vdwg.mxu0
    %v78 = vmax.f32 %v76, 0.0
    %v79 = vld [vmem:[#allocation3] sm:$0xff]
    %v80 = vld [vmem:[#allocation3 + $0x8] sm:$0xff]
    %v81 = vld [vmem:[#allocation3 + $0x10] sm:$0xff]
    %v82 = vld [vmem:[#allocation3 + $0x18] sm:$0xff]
    %v83 = vld [vmem:[#allocation3 + $0x20] sm:$0xff]
    %v84 = vld [vmem:[#allocation3 + $0x28] sm:$0xff]
    %v85 = vld [vmem:[#allocation3 + $0x30] sm:$0xff]
    %v86 = vld [vmem:[#allocation3 + $0x38] sm:$0xff]
    %v87 = vld [vmem:[%s4] sm:$0x1]
    %v89 = vperm.slane %v87, 0
    %vm91 = vcmask 523264
    %v93 = vsel %vm91, %v78, 0
    %95 = vmatpush.msra.mxu0 0.0
    %96 = vmatpush.msra.mxu0 0.0
    %97 = vmatpush.msra.mxu0 0.0
    %98 = vmatpush.msra.mxu0 0.0
    %99 = vmatpush.msra.mxu0 0.0
    %100 = vmatpush.msra.mxu0 0.0
    %101 = vmatpush.msra.mxu0 0.0
    %102 = vmatpush.msra.mxu0 0.0
    %103 = vmatpush.msra.mxu0 %v86
    %104 = vmatpush.msra.mxu0 %v85
    %105 = vmatpush.msra.mxu0 %v84
    %106 = vmatpush.msra.mxu0 %v83
    %107 = vmatpush.msra.mxu0 %v82
    %108 = vmatpush.msra.mxu0 %v81
    %109 = vmatpush.msra.mxu0 %v80
    %110 = vmatpush.msra.mxu0 %v79
    %111 = vmatmul.f32.gmra.mxu0 %v93
    %v112 = vpop.f32.mrf.mxu0
    %v113 = vadd.f32 %v89, %v112
    %114 = vdwg.mxu0
    %v115 = vmax.f32 %v113, 0.0
    %v116 = vld [vmem:[%s5] sm:$0x1]
    %v118 = vperm.slane %v116, 0
    %v120 = vmul.f32 %v115, %v118
    %121 = vadd.xlane.f32.xlu0 %v120
    %v122 = vpop.xlane.xlu0 %121
    %v123 = vld [vmem:[#allocation2] sm:$0x1]
    %v125 = vperm.slane %v123, 0
    %v127 = vadd.f32 %v122, %v125
    %vm128 = vcmask 7168
    %129 = vst.msk [vmem:[%s7] sm:$0xff] %vm128, %v127
    // Predicated region
    $region34: #{tpu_custom_call.1} parent=1 // pred_check
      _
    $region35: #{tpu_custom_call.1} parent=1 // pred_check_branch
      %131 = sbr.rel (0) target = $region37
    $region36: #{tpu_custom_call.1} parent=1 // pred_region
      _
    $region37: #{tpu_custom_call.1} parent=1 // pred_fallthru
      _
    // Predicated region
    $region38: #{tpu_custom_call.1} parent=1 // pred_check
      _
    $region39: #{tpu_custom_call.1} parent=1 // pred_check_branch
      %133 = sbr.rel (0) target = $region41
    $region40: #{tpu_custom_call.1} parent=1 // pred_region
      _
    $region41: #{tpu_custom_call.1} parent=1 // pred_fallthru
      _
    %134 = vsyncpa [#allocation4], 1

</llo_original>
